<compile_context>
chip_gen: v7x
topology: tpu7x:2x2x1
jax: 0.10.0
libtpu: 0.0.40
codegen_flags: <defaults>
</compile_context>

<pallas_src>
import jax
import jax.numpy as jnp
from jax.experimental import pallas as pl
from jax.experimental.pallas import tpu as pltpu


# ----------------------------------------------------------------------------
# Tiling helpers (padding-aware VMEM accounting).
# ----------------------------------------------------------------------------

def _round_up(v, m):
    return ((v + m - 1) // m) * m


def _sublane_tile(dtype):
    itemsize = jnp.dtype(dtype).itemsize
    return max(8, 32 // max(1, itemsize))       # 8 for f32, 16 for bf16, 32 for i8


def _padded_block_bytes(bt, lanes, dtype):
    itemsize = jnp.dtype(dtype).itemsize
    return _round_up(max(1, bt), _sublane_tile(dtype)) * _round_up(max(1, lanes), 128) * itemsize


def _two_tensorcores():
    """True only on chips with 2 TensorCores (v7x); v5e/v6e have 1 TC."""
    try:
        kind = (getattr(jax.devices()[0], "device_kind", "") or "").lower()
        return ("v7" in kind) or ("7x" in kind)
    except Exception:
        return False


def _block_budget_bytes():
    # v7x: bigger blocks (higher HBM BW -> fixed step overhead hurts more),
    # still only 4 x 4 MiB = 16 MiB double-buffered, under its 32 MiB default.
    # v5e/v6e: 4 x 2 MiB = 8 MiB, under v5e's 16 MiB default scoped VMEM.
    return (4 << 20) if _two_tensorcores() else (2 << 20)


def _pick_batch_tile(batch, lanes, dtype, budget_bytes, want_blocks=1):
    """Largest divisor bt of batch s.t. the (8,128)-padded (bt, lanes) block
    fits the budget, bt is BlockSpec-legal (bt == batch or bt % 8 == 0), and
    (best effort) batch // bt >= want_blocks."""
    def legal(bt):
        return (bt == batch or bt % 8 == 0) and \
            _padded_block_bytes(bt, lanes, dtype) <= budget_bytes

    divisors = [d for d in range(1, batch + 1) if batch % d == 0]
    for d in sorted(divisors, reverse=True):
        if legal(d) and batch // d >= want_blocks:
            return d
    for d in sorted(divisors, reverse=True):
        if legal(d):
            return d
    return batch        # fall back to full batch (always BlockSpec-legal)


def _pick_lane_tile(n, max_lanes=8192):
    """Largest divisor of n that is a multiple of 128 (or n itself) and
    <= max_lanes."""
    if n <= max_lanes:
        return n
    best = None
    for d in range(128, min(n, max_lanes) + 1, 128):
        if n % d == 0:
            best = d
    return best if best is not None else n


# ----------------------------------------------------------------------------
# Kernels.
# ----------------------------------------------------------------------------

def _make_rsoftmax_kernel(radix, cardinality, r):
    """Softmax over the radix groups of a lane-dense (bt, n) row block.

    Input flat channel order : (cardinality, radix, r)
    Output flat channel order: (radix, cardinality, r)   (the torch transpose)
    Both orders are handled with static lane slices; softmax is over radix.
    """
    def kernel(x_ref, o_ref):
        for c in range(cardinality):
            xs = [
                x_ref[:, (c * radix + k) * r:(c * radix + k + 1) * r].astype(jnp.float32)
                for k in range(radix)
            ]
            m = xs[0]
            for k in range(1, radix):
                m = jnp.maximum(m, xs[k])
            es = [jnp.exp(xk - m) for xk in xs]
            s = es[0]
            for k in range(1, radix):
                s = s + es[k]
            inv = pl.reciprocal(s, approx=False)    # exact divide semantics (EUP)
            for k in range(radix):
                o_ref[:, (k * cardinality + c) * r:(k * cardinality + c + 1) * r] = (
                    (es[k] * inv).astype(o_ref.dtype))
    return kernel


def _sigmoid_kernel(x_ref, o_ref):
    o_ref[...] = jax.nn.sigmoid(x_ref[...])


# ----------------------------------------------------------------------------
# Wrappers.
# ----------------------------------------------------------------------------

def _sigmoid(xf):
    b, n = xf.shape
    budget = _block_budget_bytes()
    nt = _pick_lane_tile(n)
    want_blocks = 2 if (_two_tensorcores() and b >= 2) else 1
    bt = _pick_batch_tile(b, nt, xf.dtype, budget, want_blocks)
    return pl.pallas_call(
        _sigmoid_kernel,
        out_shape=jax.ShapeDtypeStruct((b, n), xf.dtype),
        grid=(b // bt, n // nt),
        in_specs=[pl.BlockSpec((bt, nt), lambda i, j: (i, j))],
        out_specs=pl.BlockSpec((bt, nt), lambda i, j: (i, j)),
        compiler_params=pltpu.CompilerParams(
            dimension_semantics=("parallel", "parallel")),
    )(xf)


def rsoftmax(x, radix, cardinality):
    """Pallas TPU implementation of ResNeSt rSoftMax.forward."""
    batch = x.shape[0]
    xf = x.reshape(batch, -1)
    n = xf.shape[1]

    if radix <= 1:
        # TODO(synk): in a full model this standalone elementwise sigmoid would
        # normally be fused into the producing op by XLA; kept in Pallas here.
        return _sigmoid(xf).reshape(x.shape)

    assert n % (cardinality * radix) == 0, \
        "channels must be divisible by radix*cardinality"
    r = n // (cardinality * radix)

    budget = _block_budget_bytes()
    want_blocks = 2 if (_two_tensorcores() and batch >= 2) else 1
    bt = _pick_batch_tile(batch, n, xf.dtype, budget, want_blocks)

    out = pl.pallas_call(
        _make_rsoftmax_kernel(radix, cardinality, r),
        out_shape=jax.ShapeDtypeStruct((batch, n), x.dtype),
        grid=(batch // bt,),
        in_specs=[pl.BlockSpec((bt, n), lambda i: (i, 0))],
        out_specs=pl.BlockSpec((bt, n), lambda i: (i, 0)),
        compiler_params=pltpu.CompilerParams(
            dimension_semantics=("parallel",)),
    )(xf)
    return out.reshape(batch, -1)


# ----------------------------------------------------------------------------
# Reference & self-test.
# ----------------------------------------------------------------------------

def _rsoftmax_ref(x, radix, cardinality):
    batch = x.shape[0]
    if radix > 1:
        xr = x.reshape(batch, cardinality, radix, -1).transpose(0, 2, 1, 3)
        xr = jax.nn.softmax(xr, axis=1)
        return xr.reshape(batch, -1)
    return jax.nn.sigmoid(x)


if __name__ == "__main__":
    key = jax.random.PRNGKey(0)
    k1, k2, k3, k4 = jax.random.split(key, 4)

    # 1) Common ResNeSt config: radix=2, cardinality=1 (n=128, r=64).
    x_a = jax.random.normal(k1, (4, 128, 1, 1), dtype=jnp.float32)
    y_a = rsoftmax(x_a, 2, 1)
    jax.block_until_ready(y_a)
    assert y_a.shape == (4, 128)
    assert jnp.allclose(y_a, _rsoftmax_ref(x_a, 2, 1), atol=1e-5, rtol=1e-5), \
        "radix=2, card=1 mismatch"

    # 2) cardinality > 1 (in-kernel lane-slice reorder, no wrapper transpose):
    #    radix=2, cardinality=2, n=64, r=16.
    x_b = jax.random.normal(k2, (2, 64, 1, 1), dtype=jnp.float32)
    y_b = rsoftmax(x_b, 2, 2)
    jax.block_until_ready(y_b)
    assert y_b.shape == (2, 64)
    assert jnp.allclose(y_b, _rsoftmax_ref(x_b, 2, 2), atol=1e-5, rtol=1e-5), \
        "radix=2, card=2 mismatch"

    # 3) radix > 2: radix=4, cardinality=1, n=256, r=64.
    x_c = jax.random.normal(k3, (2, 256, 1, 1), dtype=jnp.float32)
    y_c = rsoftmax(x_c, 4, 1)
    jax.block_until_ready(y_c)
    assert y_c.shape == (2, 256)
    assert jnp.allclose(y_c, _rsoftmax_ref(x_c, 4, 1), atol=1e-5, rtol=1e-5), \
        "radix=4, card=1 mismatch"

    # 4) radix == 1: elementwise sigmoid, output keeps the input shape.
    x_d = jax.random.normal(k4, (2, 8, 1, 1), dtype=jnp.float32)
    y_d = rsoftmax(x_d, 1, 1)
    jax.block_until_ready(y_d)
    assert y_d.shape == x_d.shape
    assert jnp.allclose(y_d, _rsoftmax_ref(x_d, 1, 1), atol=1e-5, rtol=1e-5), \
        "sigmoid path mismatch"

    print("KERNEL_OK")
</pallas_src>

<mosaic_0001>
module attributes {stable_mosaic.version = 11 : i64} {
  func.func @kernel(%arg0: i32, %arg1: memref<4x128xf32, #tpu.memory_space<vmem>>, %arg2: memref<4x128xf32, #tpu.memory_space<vmem>>) attributes {dimension_semantics = [#tpu.dimension_semantics<parallel>], iteration_bounds = array<i64: 1>, scalar_prefetch = 0 : i64, scratch_operands = 0 : i64, tpu.core_type = #tpu.core_type<tc>, window_params = [{transform_indices = @transform_0, window_bounds = array<i64: 4, 128>}, {transform_indices = @transform_1, window_bounds = array<i64: 4, 128>}]} {
    %c0 = arith.constant 0 : index
    %c0_0 = arith.constant 0 : index
    %0 = vector.load %arg1[%c0, %c0_0] : memref<4x128xf32, #tpu.memory_space<vmem>>, vector<4x64xf32>
    %c0_1 = arith.constant 0 : index
    %c64 = arith.constant 64 : index
    %1 = vector.load %arg1[%c0_1, %c64] : memref<4x128xf32, #tpu.memory_space<vmem>>, vector<4x64xf32>
    %2 = arith.maximumf %0, %1 : vector<4x64xf32>
    %3 = arith.subf %0, %2 : vector<4x64xf32>
    %4 = math.exp %3 : vector<4x64xf32>
    %5 = arith.subf %1, %2 : vector<4x64xf32>
    %6 = math.exp %5 : vector<4x64xf32>
    %7 = arith.addf %4, %6 : vector<4x64xf32>
    %8 = tpu.reciprocal %7 : vector<4x64xf32> -> vector<4x64xf32>
    %9 = arith.mulf %4, %8 : vector<4x64xf32>
    %c0_2 = arith.constant 0 : index
    %c0_3 = arith.constant 0 : index
    %10 = vector.load %arg2[%c0_2, %c0_3] : memref<4x128xf32, #tpu.memory_space<vmem>>, vector<4x64xf32>
    tpu.vector_store %arg2[%c0_2, %c0_3], %9 {strides = array<i32>} : memref<4x128xf32, #tpu.memory_space<vmem>>, vector<4x64xf32>,
    %11 = arith.mulf %6, %8 : vector<4x64xf32>
    %c0_4 = arith.constant 0 : index
    %c64_5 = arith.constant 64 : index
    %12 = vector.load %arg2[%c0_4, %c64_5] : memref<4x128xf32, #tpu.memory_space<vmem>>, vector<4x64xf32>
    tpu.vector_store %arg2[%c0_4, %c64_5], %11 {strides = array<i32>} : memref<4x128xf32, #tpu.memory_space<vmem>>, vector<4x64xf32>,
    return
  }
  func.func @transform_0(%arg0: i32) -> (i32, i32) {
    %c0_i32 = arith.constant 0 : i32
    %c0_i32_0 = arith.constant 0 : i32
    return %arg0, %c0_i32 : i32, i32
  }
  func.func @transform_1(%arg0: i32) -> (i32, i32) {
    %c0_i32 = arith.constant 0 : i32
    %c0_i32_0 = arith.constant 0 : i32
    return %arg0, %c0_i32 : i32, i32
  }
}

</mosaic_0001>

<llo_original>
// kernel: tpu_custom_call.1
$region0: #{tpu_custom_call.1}
  #allocation0 [shape = 'u32[]', space=smem, size = 0x4, offset = 0x4, fixed_abs, tag = 'smem constant byte address 0x4 - core index']
  #allocation1 [shape = 'u32[144,128]{1,0:T(1,128)}', space=vmem, size = 0x12000, scoped, tag = 'internal scratch']
  %s0 = inlined_call_operand.hbm [shape: f32[4,128], index: 0, kind: input, shape index: {}]
  %s1 = inlined_call_operand.hbm [shape: f32[4,128], index: 1, kind: output, shape index: {}]
  %s2 = sld [smem:[#allocation0]]
  $region18: #{tpu_custom_call.1} parent=0
    _
  %s4 = ssub.s32 1, %s2
  %s5 = scalar_select 0, %s4, %s2
  $region1: #{tpu_custom_call.1} parent=0
    #allocation2 [shape = 'u8[2048]{0}', space=vmem, size = 0x800, scoped, tag = 'input window, operand 0, single buffered']
    #allocation3 [shape = 's32[1]{0}', space=sflag, size = 0x4, scoped, tag = 'scoped memory for tpu_custom_call.1']
    #allocation4 [shape = 's32[1]{0}', space=sflag, size = 0x4, scoped, tag = 'scoped memory for tpu_custom_call.1']
    #allocation5 [shape = 'u8[2048]{0}', space=vmem, size = 0x800, scoped, tag = 'output window, operand 0, single buffered']
    %6 = vsyncpa [#allocation3], 0
    %7 = vsyncpa [#allocation4], 0
    // Predicated region
    $region2: #{tpu_custom_call.1} parent=1 // pred_check
      _
    $region3: #{tpu_custom_call.1} parent=1 // pred_check_branch
      %9 = sbr.rel (0) target = $region5
    $region4: #{tpu_custom_call.1} parent=1 // pred_region
      %s11 = ssub.s32 64, 64
      %12 = vsyncadd [#allocation3], %s11
      %s14 = sshll.u32 [#allocation2], 4
      %s15 = int_to_ptr.vmem [resolvable:$true] %s14
      %17 = dma.hbm_to_vmem [thread:$0]  %s0, 64, %s15, [#allocation3]
    $region5: #{tpu_custom_call.1} parent=1 // pred_fallthru
      _
    // Predicated region
    $region6: #{tpu_custom_call.1} parent=1 // pred_check
      _
    $region7: #{tpu_custom_call.1} parent=1 // pred_check_branch
      %19 = sbr.rel (0) target = $region9
    $region8: #{tpu_custom_call.1} parent=1 // pred_region
      %20 = dma.done [#allocation3], 64
    $region9: #{tpu_custom_call.1} parent=1 // pred_fallthru
      _
    %v21 = vld [vmem:[#allocation2] sm:$0xf]
    %23 = vrot.lane.b32.xlu0 %v21, 64
    %v24 = vpop.permute.xlu0 %23
    %v26 = vmax.f32 %v21, %v24
    %v27 = vsub.f32 %v21, %v26
    %v28 = vmul.f32 %v27, 1.442695
    %v29 = vpow.pop %v28
    %31 = vrot.lane.b32.xlu0 %v26, 64
    %v32 = vpop.permute.xlu0 %31
    %v34 = vsub.f32 %v21, %v32
    %v35 = vmul.f32 %v34, 1.442695
    %v36 = vpow.pop %v35
    %38 = vrot.lane.b32.xlu0 %v36, 64
    %v39 = vpop.permute.xlu0 %38
    %v41 = vadd.f32 %v29, %v39
    %v42 = vrcp.pop %v41
    %v43 = vmul.f32 %v29, %v42
    %vm44 = vcmask 519168
    %45 = vst.msk [vmem:[#allocation5] sm:$0xf] %vm44, %v43
    %47 = vrot.lane.b32.xlu0 %v42, 64
    %v48 = vpop.permute.xlu0 %47
    %v50 = vmul.f32 %v36, %v48
    %vm51 = vcmask 1043968
    %52 = vst.msk [vmem:[#allocation5] sm:$0xf] %vm51, %v50
    // Predicated region
    $region10: #{tpu_custom_call.1} parent=1 // pred_check
      _
    $region11: #{tpu_custom_call.1} parent=1 // pred_check_branch
      %54 = sbr.rel (0) target = $region13
    $region12: #{tpu_custom_call.1} parent=1 // pred_region
      %s56 = ssub.s32 64, 64
      %57 = vsyncadd [#allocation4], %s56
      %s59 = sshll.u32 [#allocation5], 4
      %s60 = int_to_ptr.vmem [resolvable:$true] %s59
      %62 = dma.vmem_to_hbm [thread:$0]  %s60, 64, %s1, [#allocation4]
    $region13: #{tpu_custom_call.1} parent=1 // pred_fallthru
      _
    // Predicated region
    $region14: #{tpu_custom_call.1} parent=1 // pred_check
      _
    $region15: #{tpu_custom_call.1} parent=1 // pred_check_branch
      %64 = sbr.rel (0) target = $region17
    $region16: #{tpu_custom_call.1} parent=1 // pred_region
      %65 = dma.done [#allocation4], 64
    $region17: #{tpu_custom_call.1} parent=1 // pred_fallthru
      _
    %66 = vsyncpa [#allocation3], 1
    %67 = vsyncpa [#allocation4], 1

</llo_original>
